<compile_context>
chip_gen: v7x
topology: tpu7x:2x2x1
jax: 0.10.0
libtpu: 0.0.40
codegen_flags: <defaults>
</compile_context>

<pallas_src>
import functools

import jax
import jax.numpy as jnp
from jax.experimental import pallas as pl
from jax.experimental.pallas import tpu as pltpu


# ----------------------------------------------------------------------------
# Kernel: Nb batch elements per grid step, everything fused in VMEM/vregs.
# ----------------------------------------------------------------------------
def _ncc_kernel(bandh_ref, bandw_ref, yt_ref, yp_ref, out_ref, *,
                Nb, C, H, W, win, squared, eps, emit_map):
    # NOTE: the reference uses np.prod(filt.shape) = C*C*win*win (a quirk of the
    # PyTorch module) -- reproduced exactly here.
    win_size = float(C * C * win * win)
    inv_ws = 1.0 / win_size

    I = yt_ref[...].astype(jnp.float32)        # (Nb, C, H, W)
    J = yp_ref[...].astype(jnp.float32)

    # ---- channel reduction + elementwise products (VPU) ----
    Ic = jnp.sum(I, axis=1)                    # (Nb, H, W)
    Jc = jnp.sum(J, axis=1)
    I2c = jnp.sum(I * I, axis=1)
    J2c = jnp.sum(J * J, axis=1)
    IJc = jnp.sum(I * J, axis=1)

    # ---- fused zero-padded box filter: 2 MXU matmuls for all 5*Nb fields ----
    F = jnp.concatenate([Ic, Jc, I2c, J2c, IJc], axis=1)   # (Nb, 5H, W)
    F = F.reshape(Nb * 5 * H, W)
    T = jnp.dot(F, bandw_ref[...], preferred_element_type=jnp.float32)
    O = jnp.dot(bandh_ref[...], T, preferred_element_type=jnp.float32)
    O = O.reshape(Nb, 5, H, W)
    I_sum, J_sum, I2_sum, J2_sum, IJ_sum = (O[:, k] for k in range(5))

    # ---- local NCC statistics (matches the PyTorch reference exactly) ----
    u_I = I_sum * inv_ws
    u_J = J_sum * inv_ws
    cross = IJ_sum - u_J * I_sum - u_I * J_sum + u_I * u_J * win_size
    I_var = I2_sum - 2.0 * u_I * I_sum + u_I * u_I * win_size
    J_var = J2_sum - 2.0 * u_J * J_sum + u_J * u_J * win_size

    if squared:
        cc = (cross * cross) / jnp.maximum(I_var * J_var, eps)
    else:
        cc = (cross
              * jax.lax.rsqrt(jnp.maximum(I_var, eps))
              * jax.lax.rsqrt(jnp.maximum(J_var, eps)))

    if emit_map:
        # reduction != 'mean': emit the per-batch cc map (channels identical).
        out_ref[...] = cc.astype(out_ref.dtype)
    else:
        # reduction == 'mean': only the scalar sum leaves the kernel.
        @pl.when(pl.program_id(0) == 0)
        def _():
            out_ref[...] = jnp.zeros_like(out_ref)

        part = jnp.sum(cc.reshape(Nb * H, W), axis=1, keepdims=True)   # (Nb*H, 1)
        out_ref[...] += jnp.sum(part, axis=0, keepdims=True)           # (1, 1)


# ----------------------------------------------------------------------------
# Wrapper matching NCC(window=9, squared=False, eps=1e-6, reduction='mean')
# ----------------------------------------------------------------------------
def _band(n, pad):
    idx = jnp.arange(n)
    return (jnp.abs(idx[:, None] - idx[None, :]) <= pad).astype(jnp.float32)


def _pick_nb(N, C, H, W, itemsize, budget_bytes=8 * 1024 * 1024):
    """Largest divisor of N whose per-step VMEM footprint fits the budget."""
    best = 1
    for nb in range(1, N + 1):
        if N % nb:
            continue
        per_step = (2 * 2 * nb * C * H * W * itemsize            # input double-buffers
                    + 20 * nb * H * W * 4                        # live f32 intermediates
                    + (5 * nb * H) * (5 * nb * H + 2 * W) * 4)   # band block + matmul slabs
        if per_step <= budget_bytes:
            best = nb
    return best


def ncc_loss(y_true, y_pred, *, window=9, squared=False, eps=1e-6,
             reduction='mean'):
    assert y_true.shape == y_pred.shape and y_true.ndim == 4
    N, C, H, W = y_true.shape
    pad = window // 2
    itemsize = jnp.dtype(y_true.dtype).itemsize

    Nb = _pick_nb(N, C, H, W, itemsize)
    steps = N // Nb

    # Hoisted band matrices (zero-padded separable box filter), built once.
    band_w = _band(W, pad)                                            # (W, W)
    band_hblk = jnp.kron(jnp.eye(Nb * 5, dtype=jnp.float32),
                         _band(H, pad))                               # (Nb*5*H, Nb*5*H)

    emit_map = (reduction != 'mean')

    kernel = functools.partial(_ncc_kernel, Nb=Nb, C=C, H=H, W=W,
                               win=window, squared=squared, eps=eps,
                               emit_map=emit_map)

    vmem_est = (2 * 2 * Nb * C * H * W * itemsize
                + band_hblk.size * 4 + band_w.size * 4
                + 24 * Nb * H * W * 4
                + 2 * Nb * 5 * H * W * 4)
    vmem_limit = int(min(96 * 1024 * 1024, max(32 * 1024 * 1024, 3 * vmem_est)))

    in_specs = [
        pl.BlockSpec(band_hblk.shape, lambda n: (0, 0)),        # resident, single DMA
        pl.BlockSpec(band_w.shape, lambda n: (0, 0)),           # resident, single DMA
        pl.BlockSpec((Nb, C, H, W), lambda n: (n, 0, 0, 0)),
        pl.BlockSpec((Nb, C, H, W), lambda n: (n, 0, 0, 0)),
    ]

    if emit_map:
        out_shape = jax.ShapeDtypeStruct((N, H, W), jnp.float32)
        out_specs = pl.BlockSpec((Nb, H, W), lambda n: (n, 0, 0))
        dim_sem = ("parallel",)
    else:
        out_shape = jax.ShapeDtypeStruct((1, 1), jnp.float32)
        out_specs = pl.BlockSpec((1, 1), lambda n: (0, 0))      # scalar accumulator
        dim_sem = ("arbitrary",)                                # sequential accumulation

    out = pl.pallas_call(
        kernel,
        out_shape=out_shape,
        grid_spec=pltpu.PrefetchScalarGridSpec(
            num_scalar_prefetch=0,
            grid=(steps,),
            in_specs=in_specs,
            out_specs=out_specs,
        ),
        compiler_params=pltpu.CompilerParams(
            dimension_semantics=dim_sem,
            vmem_limit_bytes=vmem_limit),
    )(band_hblk, band_w, y_true, y_pred)

    if reduction == 'mean':
        # All C channels of the reference cc map are identical, so
        # mean over [N,C,H,W] == (sum over [N,H,W]) / (N*H*W).
        return 1.0 - out[0, 0] / float(N * H * W)
    # Non-'mean' path: replicate the identical channels like the torch conv.
    return jnp.broadcast_to(out[:, None, :, :], (N, C, H, W)).astype(y_true.dtype)


# ----------------------------------------------------------------------------
# Pure-JAX reference (mirrors the PyTorch module) for a sanity check.
# ----------------------------------------------------------------------------
def _ncc_reference(y_true, y_pred, window=9, squared=False, eps=1e-6):
    N, C, H, W = y_true.shape
    pad = window // 2
    filt = jnp.ones((C, C, window, window), jnp.float32)

    def conv(x):
        return jax.lax.conv_general_dilated(
            x, filt, window_strides=(1, 1),
            padding=[(pad, pad), (pad, pad)],
            dimension_numbers=('NCHW', 'OIHW', 'NCHW'),
            precision=jax.lax.Precision.HIGHEST)

    I, J = y_true, y_pred
    I_sum, J_sum = conv(I), conv(J)
    I2_sum, J2_sum, IJ_sum = conv(I * I), conv(J * J), conv(I * J)
    win_size = C * C * window * window
    u_I = I_sum / win_size
    u_J = J_sum / win_size
    cross = IJ_sum - u_J * I_sum - u_I * J_sum + u_I * u_J * win_size
    I_var = I2_sum - 2 * u_I * I_sum + u_I * u_I * win_size
    J_var = J2_sum - 2 * u_J * J_sum + u_J * u_J * win_size
    if squared:
        cc = cross ** 2 / jnp.maximum(I_var * J_var, eps)
    else:
        cc = cross / (jnp.sqrt(jnp.maximum(I_var, eps)) *
                      jnp.sqrt(jnp.maximum(J_var, eps)))
    return -jnp.mean(cc) + 1.0


if __name__ == "__main__":
    key = jax.random.PRNGKey(0)
    k1, k2 = jax.random.split(key)
    # PyTorch-style NCHW inputs: batch=2, channels=4, spatial 16x16
    y_true = jax.random.normal(k1, (2, 4, 16, 16), jnp.float32)
    y_pred = y_true + 0.1 * jax.random.normal(k2, (2, 4, 16, 16), jnp.float32)

    # reduction='mean' path (scalar-only kernel, no cc-map writeback)
    loss = jax.jit(ncc_loss)(y_true, y_pred)
    loss = jax.block_until_ready(loss)

    ref = _ncc_reference(y_true, y_pred)
    assert loss.shape == (), loss.shape
    assert bool(jnp.isfinite(loss)), float(loss)
    assert abs(float(loss) - float(ref)) < 5e-3, (float(loss), float(ref))

    # reduction != 'mean' path (raw cc map, channels broadcast)
    cc_map = jax.jit(functools.partial(ncc_loss, reduction='none'))(y_true, y_pred)
    cc_map = jax.block_until_ready(cc_map)
    assert cc_map.shape == (2, 4, 16, 16), cc_map.shape
    assert bool(jnp.all(jnp.isfinite(cc_map)))
    assert abs(float(1.0 - jnp.mean(cc_map)) - float(loss)) < 5e-3

    print("KERNEL_OK")
</pallas_src>

<mosaic_0001>
module attributes {stable_mosaic.version = 11 : i64} {
  func.func @_ncc_kernel(%arg0: i32, %arg1: memref<160x160xf32, #tpu.memory_space<vmem>>, %arg2: memref<16x16xf32, #tpu.memory_space<vmem>>, %arg3: memref<2x4x16x16xf32, #tpu.memory_space<vmem>>, %arg4: memref<2x4x16x16xf32, #tpu.memory_space<vmem>>, %arg5: memref<1x1xf32, #tpu.memory_space<vmem>>) attributes {dimension_semantics = [#tpu.dimension_semantics<arbitrary>], iteration_bounds = array<i64: 1>, scalar_prefetch = 0 : i64, scratch_operands = 0 : i64, tpu.core_type = #tpu.core_type<tc>, window_params = [{pipeline_mode = #tpu.pipeline_mode<synchronous>, transform_indices = @transform_0, window_bounds = array<i64: 160, 160>}, {pipeline_mode = #tpu.pipeline_mode<synchronous>, transform_indices = @transform_1, window_bounds = array<i64: 16, 16>}, {transform_indices = @transform_2, window_bounds = array<i64: 2, 4, 16, 16>}, {transform_indices = @transform_3, window_bounds = array<i64: 2, 4, 16, 16>}, {pipeline_mode = #tpu.pipeline_mode<synchronous>, transform_indices = @transform_4, window_bounds = array<i64: 1, 1>}]} {
    %c0 = arith.constant 0 : index
    %c0_0 = arith.constant 0 : index
    %c0_1 = arith.constant 0 : index
    %c0_2 = arith.constant 0 : index
    %0 = vector.load %arg3[%c0, %c0_0, %c0_1, %c0_2] : memref<2x4x16x16xf32, #tpu.memory_space<vmem>>, vector<2x4x16x16xf32>
    %c0_3 = arith.constant 0 : index
    %c0_4 = arith.constant 0 : index
    %c0_5 = arith.constant 0 : index
    %c0_6 = arith.constant 0 : index
    %1 = vector.load %arg4[%c0_3, %c0_4, %c0_5, %c0_6] : memref<2x4x16x16xf32, #tpu.memory_space<vmem>>, vector<2x4x16x16xf32>
    %cst = arith.constant dense<0.000000e+00> : vector<2x16x16xf32>
    %2 = vector.multi_reduction <add>, %0, %cst [1] : vector<2x4x16x16xf32> to vector<2x16x16xf32>
    %cst_7 = arith.constant dense<0.000000e+00> : vector<2x16x16xf32>
    %3 = vector.multi_reduction <add>, %1, %cst_7 [1] : vector<2x4x16x16xf32> to vector<2x16x16xf32>
    %4 = arith.mulf %0, %0 : vector<2x4x16x16xf32>
    %cst_8 = arith.constant dense<0.000000e+00> : vector<2x16x16xf32>
    %5 = vector.multi_reduction <add>, %4, %cst_8 [1] : vector<2x4x16x16xf32> to vector<2x16x16xf32>
    %6 = arith.mulf %1, %1 : vector<2x4x16x16xf32>
    %cst_9 = arith.constant dense<0.000000e+00> : vector<2x16x16xf32>
    %7 = vector.multi_reduction <add>, %6, %cst_9 [1] : vector<2x4x16x16xf32> to vector<2x16x16xf32>
    %8 = arith.mulf %0, %1 : vector<2x4x16x16xf32>
    %cst_10 = arith.constant dense<0.000000e+00> : vector<2x16x16xf32>
    %9 = vector.multi_reduction <add>, %8, %cst_10 [1] : vector<2x4x16x16xf32> to vector<2x16x16xf32>
    %10 = tpu.concatenate %2, %3, %5, %7, %9 in 1 : vector<2x16x16xf32>, vector<2x16x16xf32>, vector<2x16x16xf32>, vector<2x16x16xf32>, vector<2x16x16xf32> -> vector<2x80x16xf32>
    %11 = vector.shape_cast %10 : vector<2x80x16xf32> to vector<160x16xf32>
    %c0_11 = arith.constant 0 : index
    %c0_12 = arith.constant 0 : index
    %12 = vector.load %arg2[%c0_11, %c0_12] : memref<16x16xf32, #tpu.memory_space<vmem>>, vector<16x16xf32>
    %cst_13 = arith.constant dense<0.000000e+00> : vector<160x16xf32>
    %13 = tpu.matmul %11, %12, %cst_13 {dimension_numbers = #tpu.dot_dimension_numbers<[1], [0], [0], [1], [0, 0, 1, 1], [], []>} : vector<160x16xf32>, vector<16x16xf32>, vector<160x16xf32> -> vector<160x16xf32>
    %c0_14 = arith.constant 0 : index
    %c0_15 = arith.constant 0 : index
    %14 = vector.load %arg1[%c0_14, %c0_15] : memref<160x160xf32, #tpu.memory_space<vmem>>, vector<160x160xf32>
    %cst_16 = arith.constant dense<0.000000e+00> : vector<160x16xf32>
    %15 = tpu.matmul %14, %13, %cst_16 {dimension_numbers = #tpu.dot_dimension_numbers<[1], [0], [0], [1], [0, 0, 1, 1], [], []>} : vector<160x160xf32>, vector<160x16xf32>, vector<160x16xf32> -> vector<160x16xf32>
    %16 = vector.shape_cast %15 : vector<160x16xf32> to vector<2x5x16x16xf32>
    %17 = vector.extract_strided_slice %16 {offsets = [0, 0, 0, 0], sizes = [2, 1, 16, 16], strides = [1, 1, 1, 1]} : vector<2x5x16x16xf32> to vector<2x1x16x16xf32>
    %18 = vector.shape_cast %17 : vector<2x1x16x16xf32> to vector<2x16x16xf32>
    %19 = vector.extract_strided_slice %16 {offsets = [0, 1, 0, 0], sizes = [2, 1, 16, 16], strides = [1, 1, 1, 1]} : vector<2x5x16x16xf32> to vector<2x1x16x16xf32>
    %20 = vector.shape_cast %19 : vector<2x1x16x16xf32> to vector<2x16x16xf32>
    %21 = vector.extract_strided_slice %16 {offsets = [0, 2, 0, 0], sizes = [2, 1, 16, 16], strides = [1, 1, 1, 1]} : vector<2x5x16x16xf32> to vector<2x1x16x16xf32>
    %22 = vector.shape_cast %21 : vector<2x1x16x16xf32> to vector<2x16x16xf32>
    %23 = vector.extract_strided_slice %16 {offsets = [0, 3, 0, 0], sizes = [2, 1, 16, 16], strides = [1, 1, 1, 1]} : vector<2x5x16x16xf32> to vector<2x1x16x16xf32>
    %24 = vector.shape_cast %23 : vector<2x1x16x16xf32> to vector<2x16x16xf32>
    %25 = vector.extract_strided_slice %16 {offsets = [0, 4, 0, 0], sizes = [2, 1, 16, 16], strides = [1, 1, 1, 1]} : vector<2x5x16x16xf32> to vector<2x1x16x16xf32>
    %26 = vector.shape_cast %25 : vector<2x1x16x16xf32> to vector<2x16x16xf32>
    %cst_17 = arith.constant 7.71604944E-4 : f32
    %27 = vector.broadcast %cst_17 : f32 to vector<2x16x16xf32>
    %28 = arith.mulf %18, %27 : vector<2x16x16xf32>
    %cst_18 = arith.constant 7.71604944E-4 : f32
    %29 = vector.broadcast %cst_18 : f32 to vector<2x16x16xf32>
    %30 = arith.mulf %20, %29 : vector<2x16x16xf32>
    %31 = arith.mulf %30, %18 : vector<2x16x16xf32>
    %32 = arith.subf %26, %31 : vector<2x16x16xf32>
    %33 = arith.mulf %28, %20 : vector<2x16x16xf32>
    %34 = arith.subf %32, %33 : vector<2x16x16xf32>
    %35 = arith.mulf %28, %30 : vector<2x16x16xf32>
    %cst_19 = arith.constant 1.296000e+03 : f32
    %36 = vector.broadcast %cst_19 : f32 to vector<2x16x16xf32>
    %37 = arith.mulf %35, %36 : vector<2x16x16xf32>
    %38 = arith.addf %34, %37 : vector<2x16x16xf32>
    %cst_20 = arith.constant 2.000000e+00 : f32
    %39 = vector.broadcast %cst_20 : f32 to vector<2x16x16xf32>
    %40 = arith.mulf %39, %28 : vector<2x16x16xf32>
    %41 = arith.mulf %40, %18 : vector<2x16x16xf32>
    %42 = arith.subf %22, %41 : vector<2x16x16xf32>
    %43 = arith.mulf %28, %28 : vector<2x16x16xf32>
    %cst_21 = arith.constant 1.296000e+03 : f32
    %44 = vector.broadcast %cst_21 : f32 to vector<2x16x16xf32>
    %45 = arith.mulf %43, %44 : vector<2x16x16xf32>
    %46 = arith.addf %42, %45 : vector<2x16x16xf32>
    %cst_22 = arith.constant 2.000000e+00 : f32
    %47 = vector.broadcast %cst_22 : f32 to vector<2x16x16xf32>
    %48 = arith.mulf %47, %30 : vector<2x16x16xf32>
    %49 = arith.mulf %48, %20 : vector<2x16x16xf32>
    %50 = arith.subf %24, %49 : vector<2x16x16xf32>
    %51 = arith.mulf %30, %30 : vector<2x16x16xf32>
    %cst_23 = arith.constant 1.296000e+03 : f32
    %52 = vector.broadcast %cst_23 : f32 to vector<2x16x16xf32>
    %53 = arith.mulf %51, %52 : vector<2x16x16xf32>
    %54 = arith.addf %50, %53 : vector<2x16x16xf32>
    %cst_24 = arith.constant 9.99999997E-7 : f32
    %55 = vector.broadcast %cst_24 : f32 to vector<2x16x16xf32>
    %56 = arith.maximumf %46, %55 : vector<2x16x16xf32>
    %57 = math.rsqrt %56 : vector<2x16x16xf32>
    %58 = arith.mulf %38, %57 : vector<2x16x16xf32>
    %cst_25 = arith.constant 9.99999997E-7 : f32
    %59 = vector.broadcast %cst_25 : f32 to vector<2x16x16xf32>
    %60 = arith.maximumf %54, %59 : vector<2x16x16xf32>
    %61 = math.rsqrt %60 : vector<2x16x16xf32>
    %62 = arith.mulf %58, %61 : vector<2x16x16xf32>
    %c0_i32 = arith.constant 0 : i32
    %63 = arith.cmpi eq, %arg0, %c0_i32 : i32
    %64 = arith.extui %63 : i1 to i32
    %c0_i32_26 = arith.constant 0 : i32
    %65 = arith.cmpi ne, %64, %c0_i32_26 : i32
    scf.if %65 {
      %cst_33 = arith.constant 0.000000e+00 : f32
      %74 = vector.broadcast %cst_33 : f32 to vector<1x1xf32>
      %c0_34 = arith.constant 0 : index
      %c0_35 = arith.constant 0 : index
      %75 = vector.load %arg5[%c0_34, %c0_35] : memref<1x1xf32, #tpu.memory_space<vmem>>, vector<1x1xf32>
      tpu.vector_store %arg5[%c0_34, %c0_35], %74 {strides = array<i32>} : memref<1x1xf32, #tpu.memory_space<vmem>>, vector<1x1xf32>,
    } else {
    }
    %66 = vector.shape_cast %62 : vector<2x16x16xf32> to vector<32x16xf32>
    %cst_27 = arith.constant dense<0.000000e+00> : vector<32xf32>
    %67 = vector.multi_reduction <add>, %66, %cst_27 [1] : vector<32x16xf32> to vector<32xf32>
    %68 = vector.shape_cast %67 : vector<32xf32> to vector<32x1xf32>
    %c0_28 = arith.constant 0 : index
    %c0_29 = arith.constant 0 : index
    %69 = vector.load %arg5[%c0_28, %c0_29] : memref<1x1xf32, #tpu.memory_space<vmem>>, vector<1x1xf32>
    %cst_30 = arith.constant dense<0.000000e+00> : vector<1xf32>
    %70 = vector.multi_reduction <add>, %68, %cst_30 [0] : vector<32x1xf32> to vector<1xf32>
    %71 = vector.shape_cast %70 : vector<1xf32> to vector<1x1xf32>
    %72 = arith.addf %69, %71 : vector<1x1xf32>
    %c0_31 = arith.constant 0 : index
    %c0_32 = arith.constant 0 : index
    %73 = vector.load %arg5[%c0_31, %c0_32] : memref<1x1xf32, #tpu.memory_space<vmem>>, vector<1x1xf32>
    tpu.vector_store %arg5[%c0_31, %c0_32], %72 {strides = array<i32>} : memref<1x1xf32, #tpu.memory_space<vmem>>, vector<1x1xf32>,
    return
  }
  func.func @transform_0(%arg0: i32) -> (i32, i32) {
    %c0_i32 = arith.constant 0 : i32
    %c0_i32_0 = arith.constant 0 : i32
    %c0_i32_1 = arith.constant 0 : i32
    return %c0_i32, %c0_i32_0 : i32, i32
  }
  func.func @transform_1(%arg0: i32) -> (i32, i32) {
    %c0_i32 = arith.constant 0 : i32
    %c0_i32_0 = arith.constant 0 : i32
    %c0_i32_1 = arith.constant 0 : i32
    return %c0_i32, %c0_i32_0 : i32, i32
  }
  func.func @transform_2(%arg0: i32) -> (i32, i32, i32, i32) {
    %c0_i32 = arith.constant 0 : i32
    %c0_i32_0 = arith.constant 0 : i32
    %c0_i32_1 = arith.constant 0 : i32
    %c0_i32_2 = arith.constant 0 : i32
    return %arg0, %c0_i32, %c0_i32_0, %c0_i32_1 : i32, i32, i32, i32
  }
  func.func @transform_3(%arg0: i32) -> (i32, i32, i32, i32) {
    %c0_i32 = arith.constant 0 : i32
    %c0_i32_0 = arith.constant 0 : i32
    %c0_i32_1 = arith.constant 0 : i32
    %c0_i32_2 = arith.constant 0 : i32
    return %arg0, %c0_i32, %c0_i32_0, %c0_i32_1 : i32, i32, i32, i32
  }
  func.func @transform_4(%arg0: i32) -> (i32, i32) {
    %c0_i32 = arith.constant 0 : i32
    %c0_i32_0 = arith.constant 0 : i32
    %c0_i32_1 = arith.constant 0 : i32
    return %c0_i32, %c0_i32_0 : i32, i32
  }
}

</mosaic_0001>

<llo_original>
// kernel: ncc_loss.1
$region0: #{ncc_loss.1}
  #allocation0 [shape = 'u32[]', space=smem, size = 0x4, offset = 0x4, fixed_abs, tag = 'smem constant byte address 0x4 - core index']
  #allocation1 [shape = 'u32[144,128]{1,0:T(1,128)}', space=vmem, size = 0x12000, scoped, tag = 'internal scratch']
  %s0 = inlined_call_operand.vmem [shape: f32[160,160], index: 0, kind: input, shape index: {}]
  %s1 = inlined_call_operand.vmem [shape: f32[16,16], index: 1, kind: input, shape index: {}]
  %s2 = inlined_call_operand.vmem [shape: f32[2,4,16,16], index: 2, kind: input, shape index: {}]
  %s3 = inlined_call_operand.vmem [shape: f32[2,4,16,16], index: 3, kind: input, shape index: {}]
  %s4 = inlined_call_operand.hbm [shape: f32[1,1], index: 4, kind: output, shape index: {}]
  %s5 = sld [smem:[#allocation0]]
  $region30: #{ncc_loss.1} parent=0
    _
  %s7 = ssub.s32 1, %s5
  %s8 = scalar_select 0, %s7, %s5
  $region1: #{ncc_loss.1} parent=0
    #allocation2 [shape = 'u8[512]{0}', space=vmem, size = 0x400, scoped, tag = 'output window, operand 0, single buffered']
    #allocation3 [shape = 's32[1]{0}', space=sflag, size = 0x4, scoped, tag = 'scoped memory for ncc_loss.1']
    %9 = vsyncpa [#allocation3], 0
    // Predicated region
    $region2: #{ncc_loss.1} parent=1 // pred_check
      _
    $region3: #{ncc_loss.1} parent=1 // pred_check_branch
      %11 = sbr.rel (0) target = $region5
    $region4: #{ncc_loss.1} parent=1 // pred_region
      _
    $region5: #{ncc_loss.1} parent=1 // pred_fallthru
      _
    // Predicated region
    $region6: #{ncc_loss.1} parent=1 // pred_check
      _
    $region7: #{ncc_loss.1} parent=1 // pred_check_branch
      %13 = sbr.rel (0) target = $region9
    $region8: #{ncc_loss.1} parent=1 // pred_region
      _
    $region9: #{ncc_loss.1} parent=1 // pred_fallthru
      _
    // Predicated region
    $region10: #{ncc_loss.1} parent=1 // pred_check
      _
    $region11: #{ncc_loss.1} parent=1 // pred_check_branch
      %15 = sbr.rel (0) target = $region13
    $region12: #{ncc_loss.1} parent=1 // pred_region
      _
    $region13: #{ncc_loss.1} parent=1 // pred_fallthru
      _
    // Predicated region
    $region14: #{ncc_loss.1} parent=1 // pred_check
      _
    $region15: #{ncc_loss.1} parent=1 // pred_check_branch
      %17 = sbr.rel (0) target = $region17
    $region16: #{ncc_loss.1} parent=1 // pred_region
      _
    $region17: #{ncc_loss.1} parent=1 // pred_fallthru
      _
    %v18 = vld [vmem:[%s2] sm:$0xff]
    %v19 = vld [vmem:[%s2 + $0x8] sm:$0xff]
    %v20 = vld [vmem:[%s2 + $0x10] sm:$0xff]
    %v21 = vld [vmem:[%s2 + $0x18] sm:$0xff]
    %v22 = vld [vmem:[%s2 + $0x20] sm:$0xff]
    %v23 = vld [vmem:[%s2 + $0x28] sm:$0xff]
    %v24 = vld [vmem:[%s2 + $0x30] sm:$0xff]
    %v25 = vld [vmem:[%s2 + $0x38] sm:$0xff]
    %v26 = vld [vmem:[%s2 + $0x40] sm:$0xff]
    %v27 = vld [vmem:[%s2 + $0x48] sm:$0xff]
    %v28 = vld [vmem:[%s2 + $0x50] sm:$0xff]
    %v29 = vld [vmem:[%s2 + $0x58] sm:$0xff]
    %v30 = vld [vmem:[%s2 + $0x60] sm:$0xff]
    %v31 = vld [vmem:[%s2 + $0x68] sm:$0xff]
    %v32 = vld [vmem:[%s2 + $0x70] sm:$0xff]
    %v33 = vld [vmem:[%s2 + $0x78] sm:$0xff]
    %v34 = vld [vmem:[%s3] sm:$0xff]
    %v35 = vld [vmem:[%s3 + $0x8] sm:$0xff]
    %v36 = vld [vmem:[%s3 + $0x10] sm:$0xff]
    %v37 = vld [vmem:[%s3 + $0x18] sm:$0xff]
    %v38 = vld [vmem:[%s3 + $0x20] sm:$0xff]
    %v39 = vld [vmem:[%s3 + $0x28] sm:$0xff]
    %v40 = vld [vmem:[%s3 + $0x30] sm:$0xff]
    %v41 = vld [vmem:[%s3 + $0x38] sm:$0xff]
    %v42 = vld [vmem:[%s3 + $0x40] sm:$0xff]
    %v43 = vld [vmem:[%s3 + $0x48] sm:$0xff]
    %v44 = vld [vmem:[%s3 + $0x50] sm:$0xff]
    %v45 = vld [vmem:[%s3 + $0x58] sm:$0xff]
    %v46 = vld [vmem:[%s3 + $0x60] sm:$0xff]
    %v47 = vld [vmem:[%s3 + $0x68] sm:$0xff]
    %v48 = vld [vmem:[%s3 + $0x70] sm:$0xff]
    %v49 = vld [vmem:[%s3 + $0x78] sm:$0xff]
    %vm50 = vcmask 130048
    %v51 = vsel %vm50, %v18, 0.0
    %v52 = vsel %vm50, %v20, 0.0
    %v53 = vadd.f32 %v51, %v52
    %v54 = vsel %vm50, %v22, 0.0
    %v55 = vadd.f32 %v53, %v54
    %v56 = vsel %vm50, %v24, 0.0
    %v57 = vadd.f32 %v55, %v56
    %v58 = vsel %vm50, %v19, 0.0
    %v59 = vsel %vm50, %v21, 0.0
    %v60 = vadd.f32 %v58, %v59
    %v61 = vsel %vm50, %v23, 0.0
    %v62 = vadd.f32 %v60, %v61
    %v63 = vsel %vm50, %v25, 0.0
    %v64 = vadd.f32 %v62, %v63
    %v65 = vsel %vm50, %v26, 0.0
    %v66 = vsel %vm50, %v28, 0.0
    %v67 = vadd.f32 %v65, %v66
    %v68 = vsel %vm50, %v30, 0.0
    %v69 = vadd.f32 %v67, %v68
    %v70 = vsel %vm50, %v32, 0.0
    %v71 = vadd.f32 %v69, %v70
    %v72 = vsel %vm50, %v27, 0.0
    %v73 = vsel %vm50, %v29, 0.0
    %v74 = vadd.f32 %v72, %v73
    %v75 = vsel %vm50, %v31, 0.0
    %v76 = vadd.f32 %v74, %v75
    %v77 = vsel %vm50, %v33, 0.0
    %v78 = vadd.f32 %v76, %v77
    %v79 = vsel %vm50, %v34, 0.0
    %v80 = vsel %vm50, %v36, 0.0
    %v81 = vadd.f32 %v79, %v80
    %v82 = vsel %vm50, %v38, 0.0
    %v83 = vadd.f32 %v81, %v82
    %v84 = vsel %vm50, %v40, 0.0
    %v85 = vadd.f32 %v83, %v84
    %v86 = vsel %vm50, %v35, 0.0
    %v87 = vsel %vm50, %v37, 0.0
    %v88 = vadd.f32 %v86, %v87
    %v89 = vsel %vm50, %v39, 0.0
    %v90 = vadd.f32 %v88, %v89
    %v91 = vsel %vm50, %v41, 0.0
    %v92 = vadd.f32 %v90, %v91
    %v93 = vsel %vm50, %v42, 0.0
    %v94 = vsel %vm50, %v44, 0.0
    %v95 = vadd.f32 %v93, %v94
    %v96 = vsel %vm50, %v46, 0.0
    %v97 = vadd.f32 %v95, %v96
    %v98 = vsel %vm50, %v48, 0.0
    %v99 = vadd.f32 %v97, %v98
    %v100 = vsel %vm50, %v43, 0.0
    %v101 = vsel %vm50, %v45, 0.0
    %v102 = vadd.f32 %v100, %v101
    %v103 = vsel %vm50, %v47, 0.0
    %v104 = vadd.f32 %v102, %v103
    %v105 = vsel %vm50, %v49, 0.0
    %v106 = vadd.f32 %v104, %v105
    %v107 = vmul.f32 %v18, %v18
    %v108 = vmul.f32 %v19, %v19
    %v109 = vmul.f32 %v20, %v20
    %v110 = vmul.f32 %v21, %v21
    %v111 = vmul.f32 %v22, %v22
    %v112 = vmul.f32 %v23, %v23
    %v113 = vmul.f32 %v24, %v24
    %v114 = vmul.f32 %v25, %v25
    %v115 = vmul.f32 %v26, %v26
    %v116 = vmul.f32 %v27, %v27
    %v117 = vmul.f32 %v28, %v28
    %v118 = vmul.f32 %v29, %v29
    %v119 = vmul.f32 %v30, %v30
    %v120 = vmul.f32 %v31, %v31
    %v121 = vmul.f32 %v32, %v32
    %v122 = vmul.f32 %v33, %v33
    %v123 = vsel %vm50, %v107, 0.0
    %v124 = vsel %vm50, %v109, 0.0
    %v125 = vadd.f32 %v123, %v124
    %v126 = vsel %vm50, %v111, 0.0
    %v127 = vadd.f32 %v125, %v126
    %v128 = vsel %vm50, %v113, 0.0
    %v129 = vadd.f32 %v127, %v128
    %v130 = vsel %vm50, %v108, 0.0
    %v131 = vsel %vm50, %v110, 0.0
    %v132 = vadd.f32 %v130, %v131
    %v133 = vsel %vm50, %v112, 0.0
    %v134 = vadd.f32 %v132, %v133
    %v135 = vsel %vm50, %v114, 0.0
    %v136 = vadd.f32 %v134, %v135
    %v137 = vsel %vm50, %v115, 0.0
    %v138 = vsel %vm50, %v117, 0.0
    %v139 = vadd.f32 %v137, %v138
    %v140 = vsel %vm50, %v119, 0.0
    %v141 = vadd.f32 %v139, %v140
    %v142 = vsel %vm50, %v121, 0.0
    %v143 = vadd.f32 %v141, %v142
    %v144 = vsel %vm50, %v116, 0.0
    %v145 = vsel %vm50, %v118, 0.0
    %v146 = vadd.f32 %v144, %v145
    %v147 = vsel %vm50, %v120, 0.0
    %v148 = vadd.f32 %v146, %v147
    %v149 = vsel %vm50, %v122, 0.0
    %v150 = vadd.f32 %v148, %v149
    %v151 = vmul.f32 %v34, %v34
    %v152 = vmul.f32 %v35, %v35
    %v153 = vmul.f32 %v36, %v36
    %v154 = vmul.f32 %v37, %v37
    %v155 = vmul.f32 %v38, %v38
    %v156 = vmul.f32 %v39, %v39
    %v157 = vmul.f32 %v40, %v40
    %v158 = vmul.f32 %v41, %v41
    %v159 = vmul.f32 %v42, %v42
    %v160 = vmul.f32 %v43, %v43
    %v161 = vmul.f32 %v44, %v44
    %v162 = vmul.f32 %v45, %v45
    %v163 = vmul.f32 %v46, %v46
    %v164 = vmul.f32 %v47, %v47
    %v165 = vmul.f32 %v48, %v48
    %v166 = vmul.f32 %v49, %v49
    %v167 = vsel %vm50, %v151, 0.0
    %v168 = vsel %vm50, %v153, 0.0
    %v169 = vadd.f32 %v167, %v168
    %v170 = vsel %vm50, %v155, 0.0
    %v171 = vadd.f32 %v169, %v170
    %v172 = vsel %vm50, %v157, 0.0
    %v173 = vadd.f32 %v171, %v172
    %v174 = vsel %vm50, %v152, 0.0
    %v175 = vsel %vm50, %v154, 0.0
    %v176 = vadd.f32 %v174, %v175
    %v177 = vsel %vm50, %v156, 0.0
    %v178 = vadd.f32 %v176, %v177
    %v179 = vsel %vm50, %v158, 0.0
    %v180 = vadd.f32 %v178, %v179
    %v181 = vsel %vm50, %v159, 0.0
    %v182 = vsel %vm50, %v161, 0.0
    %v183 = vadd.f32 %v181, %v182
    %v184 = vsel %vm50, %v163, 0.0
    %v185 = vadd.f32 %v183, %v184
    %v186 = vsel %vm50, %v165, 0.0
    %v187 = vadd.f32 %v185, %v186
    %v188 = vsel %vm50, %v160, 0.0
    %v189 = vsel %vm50, %v162, 0.0
    %v190 = vadd.f32 %v188, %v189
    %v191 = vsel %vm50, %v164, 0.0
    %v192 = vadd.f32 %v190, %v191
    %v193 = vsel %vm50, %v166, 0.0
    %v194 = vadd.f32 %v192, %v193
    %v195 = vmul.f32 %v18, %v34
    %v196 = vmul.f32 %v19, %v35
    %v197 = vmul.f32 %v20, %v36
    %v198 = vmul.f32 %v21, %v37
    %v199 = vmul.f32 %v22, %v38
    %v200 = vmul.f32 %v23, %v39
    %v201 = vmul.f32 %v24, %v40
    %v202 = vmul.f32 %v25, %v41
    %v203 = vmul.f32 %v26, %v42
    %v204 = vmul.f32 %v27, %v43
    %v205 = vmul.f32 %v28, %v44
    %v206 = vmul.f32 %v29, %v45
    %v207 = vmul.f32 %v30, %v46
    %v208 = vmul.f32 %v31, %v47
    %v209 = vmul.f32 %v32, %v48
    %v210 = vmul.f32 %v33, %v49
    %v211 = vsel %vm50, %v195, 0.0
    %v212 = vsel %vm50, %v197, 0.0
    %v213 = vadd.f32 %v211, %v212
    %v214 = vsel %vm50, %v199, 0.0
    %v215 = vadd.f32 %v213, %v214
    %v216 = vsel %vm50, %v201, 0.0
    %v217 = vadd.f32 %v215, %v216
    %v218 = vsel %vm50, %v196, 0.0
    %v219 = vsel %vm50, %v198, 0.0
    %v220 = vadd.f32 %v218, %v219
    %v221 = vsel %vm50, %v200, 0.0
    %v222 = vadd.f32 %v220, %v221
    %v223 = vsel %vm50, %v202, 0.0
    %v224 = vadd.f32 %v222, %v223
    %v225 = vsel %vm50, %v203, 0.0
    %v226 = vsel %vm50, %v205, 0.0
    %v227 = vadd.f32 %v225, %v226
    %v228 = vsel %vm50, %v207, 0.0
    %v229 = vadd.f32 %v227, %v228
    %v230 = vsel %vm50, %v209, 0.0
    %v231 = vadd.f32 %v229, %v230
    %v232 = vsel %vm50, %v204, 0.0
    %v233 = vsel %vm50, %v206, 0.0
    %v234 = vadd.f32 %v232, %v233
    %v235 = vsel %vm50, %v208, 0.0
    %v236 = vadd.f32 %v234, %v235
    %v237 = vsel %vm50, %v210, 0.0
    %v238 = vadd.f32 %v236, %v237
    %v239 = vld [vmem:[%s1] sm:$0xff]
    %v240 = vld [vmem:[%s1 + $0x8] sm:$0xff]
    %v242 = vsel %vm50, %v57, 0
    %v245 = vsel %vm50, %v64, 0
    %v248 = vsel %vm50, %v85, 0
    %v251 = vsel %vm50, %v92, 0
    %v254 = vsel %vm50, %v129, 0
    %v257 = vsel %vm50, %v136, 0
    %v260 = vsel %vm50, %v173, 0
    %v263 = vsel %vm50, %v180, 0
    %v266 = vsel %vm50, %v217, 0
    %v269 = vsel %vm50, %v224, 0
    %v272 = vsel %vm50, %v71, 0
    %v275 = vsel %vm50, %v78, 0
    %v278 = vsel %vm50, %v99, 0
    %v281 = vsel %vm50, %v106, 0
    %v284 = vsel %vm50, %v143, 0
    %v287 = vsel %vm50, %v150, 0
    %v290 = vsel %vm50, %v187, 0
    %v293 = vsel %vm50, %v194, 0
    %v296 = vsel %vm50, %v231, 0
    %v299 = vsel %vm50, %v238, 0
    %301 = vmatprep.subr.mxu0 0.0
    %302 = vmatpush1.msra.mxu0 %v239
    %303 = vmatprep.subr.mxu0 0.0
    %304 = vmatpush1.msra.mxu0 %v240
    %305 = vmatprep.subr.mxu0 0.0
    %306 = vmatpush1.msra.mxu0 0.0
    %307 = vmatprep.subr.mxu0 0.0
    %308 = vmatpush1.msra.mxu0 0.0
    %309 = vmatprep.subr.mxu0 0.0
    %310 = vmatpush1.msra.mxu0 0.0
    %311 = vmatprep.subr.mxu0 0.0
    %312 = vmatpush1.msra.mxu0 0.0
    %313 = vmatprep.subr.mxu0 0.0
    %314 = vmatpush1.msra.mxu0 0.0
    %315 = vmatprep.subr.mxu0 0.0
    %316 = vmatpush1.msra.mxu0 0.0
    %317 = vmatprep.subr.mxu0 0.0
    %318 = vmatpush1.msra.mxu0 0.0
    %319 = vmatprep.subr.mxu0 0.0
    %320 = vmatpush1.msra.mxu0 0.0
    %321 = vmatprep.subr.mxu0 0.0
    %322 = vmatpush1.msra.mxu0 0.0
    %323 = vmatprep.subr.mxu0 0.0
    %324 = vmatpush1.msra.mxu0 0.0
    %325 = vmatprep.subr.mxu0 0.0
    %326 = vmatpush1.msra.mxu0 0.0
    %327 = vmatprep.subr.mxu0 0.0
    %328 = vmatpush1.msra.mxu0 0.0
    %329 = vmatprep.subr.mxu0 0.0
    %330 = vmatpush1.msra.mxu0 0.0
    %331 = vmatprep.subr.mxu0 0.0
    %332 = vmatpush1.msra.mxu0 0.0
    %333 = vmatprep.subr.mxu0 0.0
    %334 = vmatpush1.msra.mxu0 0.0
    %335 = vmatprep.subr.mxu0 0.0
    %336 = vmatpush1.msra.mxu0 0.0
    %337 = vmatprep.subr.mxu0 0.0
    %338 = vmatpush1.msra.mxu0 0.0
    %339 = vmatprep.subr.mxu0 0.0
    %340 = vmatpush1.msra.mxu0 0.0
    %341 = vmatprep.subr.mxu0 0.0
    %342 = vmatpush1.msra.mxu0 0.0
    %343 = vmatprep.subr.mxu0 0.0
    %344 = vmatpush1.msra.mxu0 0.0
    %345 = vmatprep.subr.mxu0 0.0
    %346 = vmatpush1.msra.mxu0 0.0
    %347 = vmatprep.subr.mxu0 0.0
    %348 = vmatpush1.msra.mxu0 0.0
    %349 = vmatprep.subr.mxu0 0.0
    %350 = vmatpush1.msra.mxu0 0.0
    %351 = vmatprep.subr.mxu0 0.0
    %352 = vmatpush1.msra.mxu0 0.0
    %353 = vmatprep.subr.mxu0 0.0
    %354 = vmatpush1.msra.mxu0 0.0
    %355 = vmatprep.subr.mxu0 0.0
    %356 = vmatpush1.msra.mxu0 0.0
    %357 = vmatprep.subr.mxu0 0.0
    %358 = vmatpush1.msra.mxu0 0.0
    %359 = vmatprep.subr.mxu0 0.0
    %360 = vmatpush1.msra.mxu0 0.0
    %361 = vmatprep.subr.mxu0 0.0
    %362 = vmatpush1.msra.mxu0 0.0
    %363 = vmatprep.subr.mxu0 0.0
    %364 = vmatpush1.msra.mxu0 0.0
    %365 = vmatprep.mubr.f32.mxu0 0.0
    %366 = vmatmul.mubr.f32.gmra.mrb[0].mxu0 %v242
    %v367 = vpop.f32.mrb[0].mxu0
    %v368 = vadd.f32 0.0, %v367
    %v369 = vpop.f32.mrb[0].mxu0
    %370 = vmatprep.mubr.f32.mxu0 0.0
    %371 = vmatmul.mubr.f32.gmra.mrb[0].mxu0 %v245
    %v372 = vpop.f32.mrb[0].mxu0
    %v373 = vadd.f32 0.0, %v372
    %v374 = vpop.f32.mrb[0].mxu0
    %375 = vmatprep.mubr.f32.mxu0 0.0
    %376 = vmatmul.mubr.f32.gmra.mrb[0].mxu0 %v248
    %v377 = vpop.f32.mrb[0].mxu0
    %v378 = vadd.f32 0.0, %v377
    %v379 = vpop.f32.mrb[0].mxu0
    %380 = vmatprep.mubr.f32.mxu0 0.0
    %381 = vmatmul.mubr.f32.gmra.mrb[0].mxu0 %v251
    %v382 = vpop.f32.mrb[0].mxu0
    %v383 = vadd.f32 0.0, %v382
    %v384 = vpop.f32.mrb[0].mxu0
    %385 = vmatprep.mubr.f32.mxu0 0.0
    %386 = vmatmul.mubr.f32.gmra.mrb[0].mxu0 %v254
    %v387 = vpop.f32.mrb[0].mxu0
    %v388 = vadd.f32 0.0, %v387
    %v389 = vpop.f32.mrb[0].mxu0
    %390 = vmatprep.mubr.f32.mxu0 0.0
    %391 = vmatmul.mubr.f32.gmra.mrb[0].mxu0 %v257
    %v392 = vpop.f32.mrb[0].mxu0
    %v393 = vadd.f32 0.0, %v392
    %v394 = vpop.f32.mrb[0].mxu0
    %395 = vmatprep.mubr.f32.mxu0 0.0
    %396 = vmatmul.mubr.f32.gmra.mrb[0].mxu0 %v260
    %v397 = vpop.f32.mrb[0].mxu0
    %v398 = vadd.f32 0.0, %v397
    %v399 = vpop.f32.mrb[0].mxu0
    %400 = vmatprep.mubr.f32.mxu0 0.0
    %401 = vmatmul.mubr.f32.gmra.mrb[0].mxu0 %v263
    %v402 = vpop.f32.mrb[0].mxu0
    %v403 = vadd.f32 0.0, %v402
    %v404 = vpop.f32.mrb[0].mxu0
    %405 = vmatprep.mubr.f32.mxu0 0.0
    %406 = vmatmul.mubr.f32.gmra.mrb[0].mxu0 %v266
    %v407 = vpop.f32.mrb[0].mxu0
    %v408 = vadd.f32 0.0, %v407
    %v409 = vpop.f32.mrb[0].mxu0
    %410 = vmatprep.mubr.f32.mxu0 0.0
    %411 = vmatmul.mubr.f32.gmra.mrb[0].mxu0 %v269
    %v412 = vpop.f32.mrb[0].mxu0
    %v413 = vadd.f32 0.0, %v412
    %v414 = vpop.f32.mrb[0].mxu0
    %415 = vmatprep.mubr.f32.mxu0 0.0
    %416 = vmatmul.mubr.f32.gmra.mrb[0].mxu0 %v272
    %v417 = vpop.f32.mrb[0].mxu0
    %v418 = vadd.f32 0.0, %v417
    %v419 = vpop.f32.mrb[0].mxu0
    %420 = vmatprep.mubr.f32.mxu0 0.0
    %421 = vmatmul.mubr.f32.gmra.mrb[0].mxu0 %v275
    %v422 = vpop.f32.mrb[0].mxu0
    %v423 = vadd.f32 0.0, %v422
    %v424 = vpop.f32.mrb[0].mxu0
    %425 = vmatprep.mubr.f32.mxu0 0.0
    %426 = vmatmul.mubr.f32.gmra.mrb[0].mxu0 %v278
    %v427 = vpop.f32.mrb[0].mxu0
    %v428 = vadd.f32 0.0, %v427
    %v429 = vpop.f32.mrb[0].mxu0
    %430 = vmatprep.mubr.f32.mxu0 0.0
    %431 = vmatmul.mubr.f32.gmra.mrb[0].mxu0 %v281
    %v432 = vpop.f32.mrb[0].mxu0
    %v433 = vadd.f32 0.0, %v432
    %v434 = vpop.f32.mrb[0].mxu0
    %435 = vmatprep.mubr.f32.mxu0 0.0
    %436 = vmatmul.mubr.f32.gmra.mrb[0].mxu0 %v284
    %v437 = vpop.f32.mrb[0].mxu0
    %v438 = vadd.f32 0.0, %v437
    %v439 = vpop.f32.mrb[0].mxu0
    %440 = vmatprep.mubr.f32.mxu0 0.0
    %441 = vmatmul.mubr.f32.gmra.mrb[0].mxu0 %v287
    %v442 = vpop.f32.mrb[0].mxu0
    %v443 = vadd.f32 0.0, %v442
    %v444 = vpop.f32.mrb[0].mxu0
    %445 = vmatprep.mubr.f32.mxu0 0.0
    %446 = vmatmul.mubr.f32.gmra.mrb[0].mxu0 %v290
    %v447 = vpop.f32.mrb[0].mxu0
    %v448 = vadd.f32 0.0, %v447
    %v449 = vpop.f32.mrb[0].mxu0
    %450 = vmatprep.mubr.f32.mxu0 0.0
    %451 = vmatmul.mubr.f32.gmra.mrb[0].mxu0 %v293
    %v452 = vpop.f32.mrb[0].mxu0
    %v453 = vadd.f32 0.0, %v452
    %v454 = vpop.f32.mrb[0].mxu0
    %455 = vmatprep.mubr.f32.mxu0 0.0
    %456 = vmatmul.mubr.f32.gmra.mrb[0].mxu0 %v296
    %v457 = vpop.f32.mrb[0].mxu0
    %v458 = vadd.f32 0.0, %v457
    %v459 = vpop.f32.mrb[0].mxu0
    %460 = vmatprep.mubr.f32.mxu0 0.0
    %461 = vmatmul.mubr.f32.gmra.mrb[0].mxu0 %v299
    %v462 = vpop.f32.mrb[0].mxu0
    %v463 = vadd.f32 0.0, %v462
    %v464 = vpop.f32.mrb[0].mxu0
    %465 = vdwg.mxu0
    %v466 = vld [vmem:[%s0] sm:$0xff]
    %v467 = vld [vmem:[%s0 + $0x8] sm:$0xff]
    %v468 = vld [vmem:[%s0 + $0x10] sm:$0xff]
    %v469 = vld [vmem:[%s0 + $0x18] sm:$0xff]
    %v470 = vld [vmem:[%s0 + $0x20] sm:$0xff]
    %v471 = vld [vmem:[%s0 + $0x28] sm:$0xff]
    %v472 = vld [vmem:[%s0 + $0x30] sm:$0xff]
    %v473 = vld [vmem:[%s0 + $0x38] sm:$0xff]
    %v474 = vld [vmem:[%s0 + $0x40] sm:$0xff]
    %v475 = vld [vmem:[%s0 + $0x48] sm:$0xff]
    %v476 = vld [vmem:[%s0 + $0x50] sm:$0xff]
    %v477 = vld [vmem:[%s0 + $0x58] sm:$0xff]
    %v478 = vld [vmem:[%s0 + $0x60] sm:$0xff]
    %v479 = vld [vmem:[%s0 + $0x68] sm:$0xff]
    %v480 = vld [vmem:[%s0 + $0x70] sm:$0xff]
    %v481 = vld [vmem:[%s0 + $0x78] sm:$0xff]
    %v482 = vld [vmem:[%s0 + $0x80] sm:$0xff]
    %v483 = vld [vmem:[%s0 + $0x88] sm:$0xff]
    %v484 = vld [vmem:[%s0 + $0x90] sm:$0xff]
    %v485 = vld [vmem:[%s0 + $0x98] sm:$0xff]
    %v486 = vld [vmem:[%s0 + $0xa0] sm:$0xff]
    %v487 = vld [vmem:[%s0 + $0xa8] sm:$0xff]
    %v488 = vld [vmem:[%s0 + $0xb0] sm:$0xff]
    %v489 = vld [vmem:[%s0 + $0xb8] sm:$0xff]
    %v490 = vld [vmem:[%s0 + $0xc0] sm:$0xff]
    %v491 = vld [vmem:[%s0 + $0xc8] sm:$0xff]
    %v492 = vld [vmem:[%s0 + $0xd0] sm:$0xff]
    %v493 = vld [vmem:[%s0 + $0xd8] sm:$0xff]
    %v494 = vld [vmem:[%s0 + $0xe0] sm:$0xff]
    %v495 = vld [vmem:[%s0 + $0xe8] sm:$0xff]
    %v496 = vld [vmem:[%s0 + $0xf0] sm:$0xff]
    %v497 = vld [vmem:[%s0 + $0xf8] sm:$0xff]
    %v498 = vld [vmem:[%s0 + $0x100] sm:$0xff]
    %v499 = vld [vmem:[%s0 + $0x108] sm:$0xff]
    %v500 = vld [vmem:[%s0 + $0x110] sm:$0xff]
    %v501 = vld [vmem:[%s0 + $0x118] sm:$0xff]
    %v502 = vld [vmem:[%s0 + $0x120] sm:$0xff]
    %v503 = vld [vmem:[%s0 + $0x128] sm:$0xff]
    %v504 = vld [vmem:[%s0 + $0x130] sm:$0xff]
    %v505 = vld [vmem:[%s0 + $0x138] sm:$0xff]
    %vm506 = vcmask 261120
    %v508 = vsel %vm506, %v467, 0
    %v511 = vsel %vm506, %v469, 0
    %v514 = vsel %vm506, %v471, 0
    %v517 = vsel %vm506, %v473, 0
    %v520 = vsel %vm506, %v475, 0
    %v523 = vsel %vm506, %v477, 0
    %v526 = vsel %vm506, %v479, 0
    %v529 = vsel %vm506, %v481, 0
    %v532 = vsel %vm506, %v483, 0
    %v535 = vsel %vm506, %v485, 0
    %v538 = vsel %vm506, %v487, 0
    %v541 = vsel %vm506, %v489, 0
    %v544 = vsel %vm506, %v491, 0
    %v547 = vsel %vm506, %v493, 0
    %v550 = vsel %vm506, %v495, 0
    %v553 = vsel %vm506, %v497, 0
    %v556 = vsel %vm506, %v499, 0
    %v559 = vsel %vm506, %v501, 0
    %v562 = vsel %vm506, %v503, 0
    %v565 = vsel %vm506, %v505, 0
    %567 = vmatprep.subr.mxu0 0.0
    %568 = vmatpush1.msra.mxu0 %v368
    %569 = vmatprep.subr.mxu0 0.0
    %570 = vmatpush1.msra.mxu0 %v373
    %571 = vmatprep.subr.mxu0 0.0
    %572 = vmatpush1.msra.mxu0 %v378
    %573 = vmatprep.subr.mxu0 0.0
    %574 = vmatpush1.msra.mxu0 %v383
    %575 = vmatprep.subr.mxu0 0.0
    %576 = vmatpush1.msra.mxu0 %v388
    %577 = vmatprep.subr.mxu0 0.0
    %578 = vmatpush1.msra.mxu0 %v393
    %579 = vmatprep.subr.mxu0 0.0
    %580 = vmatpush1.msra.mxu0 %v398
    %581 = vmatprep.subr.mxu0 0.0
    %582 = vmatpush1.msra.mxu0 %v403
    %583 = vmatprep.subr.mxu0 0.0
    %584 = vmatpush1.msra.mxu0 %v408
    %585 = vmatprep.subr.mxu0 0.0
    %586 = vmatpush1.msra.mxu0 %v413
    %587 = vmatprep.subr.mxu0 0.0
    %588 = vmatpush1.msra.mxu0 %v418
    %589 = vmatprep.subr.mxu0 0.0
    %590 = vmatpush1.msra.mxu0 %v423
    %591 = vmatprep.subr.mxu0 0.0
    %592 = vmatpush1.msra.mxu0 %v428
    %593 = vmatprep.subr.mxu0 0.0
    %594 = vmatpush1.msra.mxu0 %v433
    %595 = vmatprep.subr.mxu0 0.0
    %596 = vmatpush1.msra.mxu0 %v438
    %597 = vmatprep.subr.mxu0 0.0
    %598 = vmatpush1.msra.mxu0 %v443
    %599 = vmatprep.subr.mxu0 0.0
    %600 = vmatpush1.msra.mxu0 %v448
    %601 = vmatprep.subr.mxu0 0.0
    %602 = vmatpush1.msra.mxu0 %v453
    %603 = vmatprep.subr.mxu0 0.0
    %604 = vmatpush1.msra.mxu0 %v458
    %605 = vmatprep.subr.mxu0 0.0
    %606 = vmatpush1.msra.mxu0 %v463
    %607 = vmatprep.subr.mxu0 0.0
    %608 = vmatpush1.msra.mxu0 0.0
    %609 = vmatprep.subr.mxu0 0.0
    %610 = vmatpush1.msra.mxu0 0.0
    %611 = vmatprep.subr.mxu0 0.0
    %612 = vmatpush1.msra.mxu0 0.0
    %613 = vmatprep.subr.mxu0 0.0
    %614 = vmatpush1.msra.mxu0 0.0
    %615 = vmatprep.subr.mxu0 0.0
    %616 = vmatpush1.msra.mxu0 0.0
    %617 = vmatprep.subr.mxu0 0.0
    %618 = vmatpush1.msra.mxu0 0.0
    %619 = vmatprep.subr.mxu0 0.0
    %620 = vmatpush1.msra.mxu0 0.0
    %621 = vmatprep.subr.mxu0 0.0
    %622 = vmatpush1.msra.mxu0 0.0
    %623 = vmatprep.subr.mxu0 0.0
    %624 = vmatpush1.msra.mxu0 0.0
    %625 = vmatprep.subr.mxu0 0.0
    %626 = vmatpush1.msra.mxu0 0.0
    %627 = vmatprep.subr.mxu0 0.0
    %628 = vmatpush1.msra.mxu0 0.0
    %629 = vmatprep.subr.mxu0 0.0
    %630 = vmatpush1.msra.mxu0 0.0
    %631 = vmatprep.mubr.f32.mxu0 %v508
    %632 = vmatmul.mubr.f32.gmra.mrb[0].mxu0 %v466
    %v633 = vpop.f32.mrb[0].mxu0
    %v634 = vadd.f32 0.0, %v633
    %v635 = vpop.f32.mrb[0].mxu0
    %636 = vmatprep.mubr.f32.mxu0 %v511
    %637 = vmatmul.mubr.f32.gmra.mrb[0].mxu0 %v468
    %v638 = vpop.f32.mrb[0].mxu0
    %v639 = vadd.f32 0.0, %v638
    %v640 = vpop.f32.mrb[0].mxu0
    %641 = vmatprep.mubr.f32.mxu0 %v514
    %642 = vmatmul.mubr.f32.gmra.mrb[0].mxu0 %v470
    %v643 = vpop.f32.mrb[0].mxu0
    %v644 = vadd.f32 0.0, %v643
    %v645 = vpop.f32.mrb[0].mxu0
    %646 = vmatprep.mubr.f32.mxu0 %v517
    %647 = vmatmul.mubr.f32.gmra.mrb[0].mxu0 %v472
    %v648 = vpop.f32.mrb[0].mxu0
    %v649 = vadd.f32 0.0, %v648
    %v650 = vpop.f32.mrb[0].mxu0
    %651 = vmatprep.mubr.f32.mxu0 %v520
    %652 = vmatmul.mubr.f32.gmra.mrb[0].mxu0 %v474
    %v653 = vpop.f32.mrb[0].mxu0
    %v654 = vadd.f32 0.0, %v653
    %v655 = vpop.f32.mrb[0].mxu0
    %656 = vmatprep.mubr.f32.mxu0 %v523
    %657 = vmatmul.mubr.f32.gmra.mrb[0].mxu0 %v476
    %v658 = vpop.f32.mrb[0].mxu0
    %v659 = vadd.f32 0.0, %v658
    %v660 = vpop.f32.mrb[0].mxu0
    %661 = vmatprep.mubr.f32.mxu0 %v526
    %662 = vmatmul.mubr.f32.gmra.mrb[0].mxu0 %v478
    %v663 = vpop.f32.mrb[0].mxu0
    %v664 = vadd.f32 0.0, %v663
    %v665 = vpop.f32.mrb[0].mxu0
    %666 = vmatprep.mubr.f32.mxu0 %v529
    %667 = vmatmul.mubr.f32.gmra.mrb[0].mxu0 %v480
    %v668 = vpop.f32.mrb[0].mxu0
    %v669 = vadd.f32 0.0, %v668
    %v670 = vpop.f32.mrb[0].mxu0
    %671 = vmatprep.mubr.f32.mxu0 %v532
    %672 = vmatmul.mubr.f32.gmra.mrb[0].mxu0 %v482
    %v673 = vpop.f32.mrb[0].mxu0
    %v674 = vadd.f32 0.0, %v673
    %v675 = vpop.f32.mrb[0].mxu0
    %676 = vmatprep.mubr.f32.mxu0 %v535
    %677 = vmatmul.mubr.f32.gmra.mrb[0].mxu0 %v484
    %v678 = vpop.f32.mrb[0].mxu0
    %v679 = vadd.f32 0.0, %v678
    %v680 = vpop.f32.mrb[0].mxu0
    %681 = vmatprep.mubr.f32.mxu0 %v538
    %682 = vmatmul.mubr.f32.gmra.mrb[0].mxu0 %v486
    %v683 = vpop.f32.mrb[0].mxu0
    %v684 = vadd.f32 0.0, %v683
    %v685 = vpop.f32.mrb[0].mxu0
    %686 = vmatprep.mubr.f32.mxu0 %v541
    %687 = vmatmul.mubr.f32.gmra.mrb[0].mxu0 %v488
    %v688 = vpop.f32.mrb[0].mxu0
    %v689 = vadd.f32 0.0, %v688
    %v690 = vpop.f32.mrb[0].mxu0
    %691 = vmatprep.mubr.f32.mxu0 %v544
    %692 = vmatmul.mubr.f32.gmra.mrb[0].mxu0 %v490
    %v693 = vpop.f32.mrb[0].mxu0
    %v694 = vadd.f32 0.0, %v693
    %v695 = vpop.f32.mrb[0].mxu0
    %696 = vmatprep.mubr.f32.mxu0 %v547
    %697 = vmatmul.mubr.f32.gmra.mrb[0].mxu0 %v492
    %v698 = vpop.f32.mrb[0].mxu0
    %v699 = vadd.f32 0.0, %v698
    %v700 = vpop.f32.mrb[0].mxu0
    %701 = vmatprep.mubr.f32.mxu0 %v550
    %702 = vmatmul.mubr.f32.gmra.mrb[0].mxu0 %v494
    %v703 = vpop.f32.mrb[0].mxu0
    %v704 = vadd.f32 0.0, %v703
    %v705 = vpop.f32.mrb[0].mxu0
    %706 = vmatprep.mubr.f32.mxu0 %v553
    %707 = vmatmul.mubr.f32.gmra.mrb[0].mxu0 %v496
    %v708 = vpop.f32.mrb[0].mxu0
    %v709 = vadd.f32 0.0, %v708
    %v710 = vpop.f32.mrb[0].mxu0
    %711 = vmatprep.mubr.f32.mxu0 %v556
    %712 = vmatmul.mubr.f32.gmra.mrb[0].mxu0 %v498
    %v713 = vpop.f32.mrb[0].mxu0
    %v714 = vadd.f32 0.0, %v713
    %v715 = vpop.f32.mrb[0].mxu0
    %716 = vmatprep.mubr.f32.mxu0 %v559
    %717 = vmatmul.mubr.f32.gmra.mrb[0].mxu0 %v500
    %v718 = vpop.f32.mrb[0].mxu0
    %v719 = vadd.f32 0.0, %v718
    %v720 = vpop.f32.mrb[0].mxu0
    %721 = vmatprep.mubr.f32.mxu0 %v562
    %722 = vmatmul.mubr.f32.gmra.mrb[0].mxu0 %v502
    %v723 = vpop.f32.mrb[0].mxu0
    %v724 = vadd.f32 0.0, %v723
    %v725 = vpop.f32.mrb[0].mxu0
    %726 = vmatprep.mubr.f32.mxu0 %v565
    %727 = vmatmul.mubr.f32.gmra.mrb[0].mxu0 %v504
    %v728 = vpop.f32.mrb[0].mxu0
    %v729 = vadd.f32 0.0, %v728
    %v730 = vpop.f32.mrb[0].mxu0
    %731 = vdwg.mxu0
    %v732 = vmul.f32 %v634, 0.00077160494
    %v733 = vmul.f32 %v639, 0.00077160494
    %v734 = vmul.f32 %v684, 0.00077160494
    %v735 = vmul.f32 %v689, 0.00077160494
    %v736 = vmul.f32 %v644, 0.00077160494
    %v737 = vmul.f32 %v649, 0.00077160494
    %v738 = vmul.f32 %v694, 0.00077160494
    %v739 = vmul.f32 %v699, 0.00077160494
    %v740 = vmul.f32 %v736, %v634
    %v741 = vmul.f32 %v737, %v639
    %v742 = vmul.f32 %v738, %v684
    %v743 = vmul.f32 %v739, %v689
    %v744 = vsub.f32 %v674, %v740
    %v745 = vsub.f32 %v679, %v741
    %v746 = vsub.f32 %v724, %v742
    %v747 = vsub.f32 %v729, %v743
    %v748 = vmul.f32 %v732, %v644
    %v749 = vmul.f32 %v733, %v649
    %v750 = vmul.f32 %v734, %v694
    %v751 = vmul.f32 %v735, %v699
    %v752 = vsub.f32 %v744, %v748
    %v753 = vsub.f32 %v745, %v749
    %v754 = vsub.f32 %v746, %v750
    %v755 = vsub.f32 %v747, %v751
    %v756 = vmul.f32 %v732, %v736
    %v757 = vmul.f32 %v733, %v737
    %v758 = vmul.f32 %v734, %v738
    %v759 = vmul.f32 %v735, %v739
    %v760 = vmul.f32 %v756, 1296.0
    %v761 = vmul.f32 %v757, 1296.0
    %v762 = vmul.f32 %v758, 1296.0
    %v763 = vmul.f32 %v759, 1296.0
    %v764 = vadd.f32 %v752, %v760
    %v765 = vadd.f32 %v753, %v761
    %v766 = vadd.f32 %v754, %v762
    %v767 = vadd.f32 %v755, %v763
    %v768 = vmul.f32 %v732, 2.0
    %v769 = vmul.f32 %v733, 2.0
    %v770 = vmul.f32 %v734, 2.0
    %v771 = vmul.f32 %v735, 2.0
    %v772 = vmul.f32 %v768, %v634
    %v773 = vmul.f32 %v769, %v639
    %v774 = vmul.f32 %v770, %v684
    %v775 = vmul.f32 %v771, %v689
    %v776 = vsub.f32 %v654, %v772
    %v777 = vsub.f32 %v659, %v773
    %v778 = vsub.f32 %v704, %v774
    %v779 = vsub.f32 %v709, %v775
    %v780 = vmul.f32 %v732, %v732
    %v781 = vmul.f32 %v733, %v733
    %v782 = vmul.f32 %v734, %v734
    %v783 = vmul.f32 %v735, %v735
    %v784 = vmul.f32 %v780, 1296.0
    %v785 = vmul.f32 %v781, 1296.0
    %v786 = vmul.f32 %v782, 1296.0
    %v787 = vmul.f32 %v783, 1296.0
    %v788 = vadd.f32 %v776, %v784
    %v789 = vadd.f32 %v777, %v785
    %v790 = vadd.f32 %v778, %v786
    %v791 = vadd.f32 %v779, %v787
    %v792 = vmul.f32 %v736, 2.0
    %v793 = vmul.f32 %v737, 2.0
    %v794 = vmul.f32 %v738, 2.0
    %v795 = vmul.f32 %v739, 2.0
    %v796 = vmul.f32 %v792, %v644
    %v797 = vmul.f32 %v793, %v649
    %v798 = vmul.f32 %v794, %v694
    %v799 = vmul.f32 %v795, %v699
    %v800 = vsub.f32 %v664, %v796
    %v801 = vsub.f32 %v669, %v797
    %v802 = vsub.f32 %v714, %v798
    %v803 = vsub.f32 %v719, %v799
    %v804 = vmul.f32 %v736, %v736
    %v805 = vmul.f32 %v737, %v737
    %v806 = vmul.f32 %v738, %v738
    %v807 = vmul.f32 %v739, %v739
    %v808 = vmul.f32 %v804, 1296.0
    %v809 = vmul.f32 %v805, 1296.0
    %v810 = vmul.f32 %v806, 1296.0
    %v811 = vmul.f32 %v807, 1296.0
    %v812 = vadd.f32 %v800, %v808
    %v813 = vadd.f32 %v801, %v809
    %v814 = vadd.f32 %v802, %v810
    %v815 = vadd.f32 %v803, %v811
    %v816 = vmax.f32 %v788, 1e-06
    %v817 = vmax.f32 %v789, 1e-06
    %v818 = vmax.f32 %v790, 1e-06
    %v819 = vmax.f32 %v791, 1e-06
    %v820 = vrsqrt.pop %v816
    %v821 = vrsqrt.pop %v817
    %v822 = vrsqrt.pop %v818
    %v823 = vrsqrt.pop %v819
    %v824 = vmul.f32 %v764, %v820
    %v825 = vmul.f32 %v765, %v821
    %v826 = vmul.f32 %v766, %v822
    %v827 = vmul.f32 %v767, %v823
    %v828 = vmax.f32 %v812, 1e-06
    %v829 = vmax.f32 %v813, 1e-06
    %v830 = vmax.f32 %v814, 1e-06
    %v831 = vmax.f32 %v815, 1e-06
    %v832 = vrsqrt.pop %v828
    %v833 = vrsqrt.pop %v829
    %v834 = vrsqrt.pop %v830
    %v835 = vrsqrt.pop %v831
    %v836 = vmul.f32 %v824, %v832
    %v837 = vmul.f32 %v825, %v833
    %v838 = vmul.f32 %v826, %v834
    %v839 = vmul.f32 %v827, %v835
    %p840 = scmp.eq.s32.totalorder 0, 0
    // Predicated region
    $region18: #{ncc_loss.1} parent=1 // pred_check
      %p841 = pneg %p840
    $region19: #{ncc_loss.1} parent=1 // pred_check_branch
      %843 = sbr.rel (%p841) target = $region21
    $region20: #{ncc_loss.1} parent=1 // pred_region
      %vm844 = vcmask 0
      %845 = vst.msk [vmem:[#allocation2] sm:$0x1] %vm844, 0.0
    $region21: #{ncc_loss.1} parent=1 // pred_fallthru
      _
    %v846 = vsel %vm50, %v836, 0.0
    %847 = vadd.xlane.f32.xlu0 %v846
    %v848 = vpop.xlane.xlu0 %847
    %v849 = vsel %vm50, %v837, 0.0
    %850 = vadd.xlane.f32.xlu0 %v849
    %v851 = vpop.xlane.xlu0 %850
    %v852 = vsel %vm50, %v838, 0.0
    %853 = vadd.xlane.f32.xlu0 %v852
    %v854 = vpop.xlane.xlu0 %853
    %v855 = vsel %vm50, %v839, 0.0
    %856 = vadd.xlane.f32.xlu0 %v855
    %v857 = vpop.xlane.xlu0 %856
    %v858 = vld [vmem:[#allocation2] sm:$0x1]
    %v859 = vadd.f32 %v848, %v851
    %v860 = vadd.f32 %v859, %v854
    %v861 = vadd.f32 %v860, %v857
    %v862 = vrot.slane %v861, 4
    %v863 = vadd.f32 %v861, %v862
    %v864 = vrot.slane %v863, 2
    %v865 = vadd.f32 %v863, %v864
    %v866 = vrot.slane %v865, 1
    %v867 = vadd.f32 %v865, %v866
    %v868 = vadd.f32 %v858, %v867
    %vm869 = vcmask 0
    %870 = vst.msk [vmem:[#allocation2] sm:$0x1] %vm869, %v868
    // Predicated region
    $region22: #{ncc_loss.1} parent=1 // pred_check
      _
    $region23: #{ncc_loss.1} parent=1 // pred_check_branch
      %872 = sbr.rel (0) target = $region25
    $region24: #{ncc_loss.1} parent=1 // pred_region
      %s874 = ssub.s32 16, 16
      %875 = vsyncadd [#allocation3], %s874
      %s877 = sshll.u32 [#allocation2], 4
      %s878 = int_to_ptr.vmem [resolvable:$true] %s877
      %880 = dma.vmem_to_hbm [thread:$0]  %s878, 16, %s4, [#allocation3]
    $region25: #{ncc_loss.1} parent=1 // pred_fallthru
      _
    // Predicated region
    $region26: #{ncc_loss.1} parent=1 // pred_check
      _
    $region27: #{ncc_loss.1} parent=1 // pred_check_branch
      %882 = sbr.rel (0) target = $region29
    $region28: #{ncc_loss.1} parent=1 // pred_region
      %883 = dma.done [#allocation3], 16
    $region29: #{ncc_loss.1} parent=1 // pred_fallthru
      _
    %884 = vsyncpa [#allocation3], 1

</llo_original>
